<compile_context>
chip_gen: v5e
topology: v5e:2x2
jax: 0.10.0
libtpu: 0.0.40
codegen_flags: <defaults>
</compile_context>

<pallas_src>
import jax
import jax.numpy as jnp
from jax import lax
from jax.experimental import pallas as pl
from jax.experimental.pallas import tpu as pltpu

BN_EPS = 1e-5
K_PAD = 32                       # 3*3*3 = 27 conv features, zero-padded to an aligned 32
VMEM_LIMIT_BYTES = 32 * 1024 * 1024


def _round_up(x, m):
    return ((x + m - 1) // m) * m


def _pick_tile_m():
    """M-tile (lane) width: larger on 128 MiB-VMEM parts (v5e/v6e), smaller on v7x (64 MiB)."""
    try:
        vmem_bytes = pltpu.get_tpu_info().vmem_capacity_bytes
    except Exception:
        vmem_bytes = 64 * 1024 * 1024
    return 8192 if vmem_bytes >= 96 * 1024 * 1024 else 4096


# ----------------------------- Pallas kernels ----------------------------- #

def stem_stats_kernel(patches_ref, w_ref, sum_ref, sumsq_ref):
    # patches_ref: (K_PAD, TM) bf16 ; w_ref: (C_pad, K_PAD) bf16
    y = jnp.dot(w_ref[...], patches_ref[...], preferred_element_type=jnp.float32)  # (C_pad, TM) f32
    tile_sum = jnp.sum(y, axis=1, keepdims=True)          # (C_pad, 1)  lane reduction (XLU)
    tile_sumsq = jnp.sum(y * y, axis=1, keepdims=True)

    @pl.when(pl.program_id(0) == 0)
    def _init():
        sum_ref[...] = jnp.zeros_like(sum_ref)
        sumsq_ref[...] = jnp.zeros_like(sumsq_ref)

    sum_ref[...] += tile_sum
    sumsq_ref[...] += tile_sumsq


def stem_apply_kernel(patches_ref, w_ref, scale_ref, shift_ref, o_ref):
    # Folded BN + ReLU: one per-channel FMA + max, lane-dense (C_pad, TM) store.
    y = jnp.dot(w_ref[...], patches_ref[...], preferred_element_type=jnp.float32)  # (C_pad, TM) f32
    o_ref[...] = jnp.maximum(y * scale_ref[...] + shift_ref[...], 0.0)


# ------------------------------ host wrapper ------------------------------ #

def _im2col_km(x, kh=3, kw=3, stride=2, pad=1):
    """x: (N, C, H, W) -> (C*kh*kw, N*H_out*W_out); feature order (C, kh, kw) matches the
    PyTorch (C_out, C_in, KH, KW) weight layout."""
    n, c, h, w = x.shape
    h_out = (h + 2 * pad - kh) // stride + 1
    w_out = (w + 2 * pad - kw) // stride + 1
    xp = jnp.pad(x, ((0, 0), (0, 0), (pad, pad), (pad, pad)))
    taps = [
        xp[:, :, i: i + stride * h_out: stride, j: j + stride * w_out: stride]
        for i in range(kh)
        for j in range(kw)
    ]                                                     # each (N, C, H_out, W_out)
    cols = jnp.stack(taps, axis=2)                        # (N, C, 9, H_out, W_out)
    cols = cols.transpose(1, 2, 0, 3, 4).reshape(c * kh * kw, n * h_out * w_out)
    return cols, h_out, w_out


def stem_forward(x, conv_weight, gamma, beta):
    """x: (N, 3, H, W) f32; conv_weight: (C_out, 3, 3, 3); gamma/beta: (C_out,). Returns NCHW f32."""
    n = x.shape[0]
    c_out = conv_weight.shape[0]

    # bf16 cast commutes with the (pure gather) im2col -> cast x first so the XLA-side
    # patch-matrix build moves bf16, not f32.
    cols, h_out, w_out = _im2col_km(x.astype(jnp.bfloat16))   # (27, M) bf16
    k, m = cols.shape

    c_pad = _round_up(c_out, 8)
    tm = min(_pick_tile_m(), _round_up(m, 128))
    m_pad = _round_up(m, tm)
    n_tiles = m_pad // tm

    # Zero-padding K -> K_PAD, M -> m_pad, C -> c_pad is numerically exact (see header).
    patches = jnp.pad(cols, ((0, K_PAD - k), (0, m_pad - m)))
    w_t = jnp.pad(conv_weight.reshape(c_out, k).astype(jnp.float32),
                  ((0, c_pad - c_out), (0, K_PAD - k))).astype(jnp.bfloat16)
    gamma_p = jnp.pad(gamma.astype(jnp.float32), (0, c_pad - c_out)).reshape(c_pad, 1)
    beta_p = jnp.pad(beta.astype(jnp.float32), (0, c_pad - c_out)).reshape(c_pad, 1)

    flops = 2 * m_pad * K_PAD * c_pad
    patch_bytes = int(patches.size) * 2
    w_bytes = int(w_t.size) * 2

    # ---- pass 1: per-channel sum / sum-of-squares over all M tiles (accumulator output) ----
    ch_sum, ch_sumsq = pl.pallas_call(
        stem_stats_kernel,
        out_shape=(jax.ShapeDtypeStruct((c_pad, 1), jnp.float32),
                   jax.ShapeDtypeStruct((c_pad, 1), jnp.float32)),
        grid_spec=pltpu.PrefetchScalarGridSpec(
            num_scalar_prefetch=0,
            grid=(n_tiles,),
            in_specs=[
                pl.BlockSpec((K_PAD, tm), lambda i: (0, i)),
                pl.BlockSpec((c_pad, K_PAD), lambda i: (0, 0)),
            ],
            out_specs=[
                pl.BlockSpec((c_pad, 1), lambda i: (0, 0)),
                pl.BlockSpec((c_pad, 1), lambda i: (0, 0)),
            ],
        ),
        compiler_params=pltpu.CompilerParams(
            dimension_semantics=("arbitrary",),
            vmem_limit_bytes=VMEM_LIMIT_BYTES),
        cost_estimate=pl.CostEstimate(flops=flops, transcendentals=0,
                                      bytes_accessed=patch_bytes + w_bytes + 2 * c_pad * 4),
    )(patches, w_t)

    # ---- fold BN into a single per-channel FMA (tiny (C_pad, 1) vectors, plain XLA) ----
    mean = ch_sum / m                                     # true M, not padded M
    var = jnp.maximum(ch_sumsq / m - mean * mean, 0.0)    # E[y^2] - mean^2 (biased, as nn.BatchNorm2d)
    scale = gamma_p * lax.rsqrt(var + BN_EPS)
    shift = beta_p - mean * scale

    # ---- pass 2: y * scale + shift, ReLU; lane-dense (C_pad, TM) output tiles ----
    out_t = pl.pallas_call(
        stem_apply_kernel,
        out_shape=jax.ShapeDtypeStruct((c_pad, m_pad), jnp.float32),
        grid_spec=pltpu.PrefetchScalarGridSpec(
            num_scalar_prefetch=0,
            grid=(n_tiles,),
            in_specs=[
                pl.BlockSpec((K_PAD, tm), lambda i: (0, i)),
                pl.BlockSpec((c_pad, K_PAD), lambda i: (0, 0)),
                pl.BlockSpec((c_pad, 1), lambda i: (0, 0)),
                pl.BlockSpec((c_pad, 1), lambda i: (0, 0)),
            ],
            out_specs=pl.BlockSpec((c_pad, tm), lambda i: (0, i)),
        ),
        compiler_params=pltpu.CompilerParams(
            dimension_semantics=("parallel",),
            vmem_limit_bytes=VMEM_LIMIT_BYTES),
        cost_estimate=pl.CostEstimate(flops=flops, transcendentals=0,
                                      bytes_accessed=patch_bytes + w_bytes + c_pad * m_pad * 4),
    )(patches, w_t, scale, shift)

    # (C_pad, M_pad) -> slice real channels / rows -> (N, C_out, H_out, W_out)
    return out_t[:c_out, :m].reshape(c_out, n, h_out, w_out).transpose(1, 0, 2, 3)


def stem_reference(x, conv_weight, gamma, beta):
    """Pure-JAX reference (matches PyTorch train-mode forward)."""
    y = lax.conv_general_dilated(
        x, conv_weight, window_strides=(2, 2), padding=((1, 1), (1, 1)),
        dimension_numbers=("NCHW", "OIHW", "NCHW"),
        precision=lax.Precision.HIGHEST,
    )
    mean = jnp.mean(y, axis=(0, 2, 3), keepdims=True)
    var = jnp.mean((y - mean) ** 2, axis=(0, 2, 3), keepdims=True)
    y_hat = (y - mean) * lax.rsqrt(var + BN_EPS)
    out = y_hat * gamma.reshape(1, -1, 1, 1) + beta.reshape(1, -1, 1, 1)
    return jnp.maximum(out, 0.0)


if __name__ == "__main__":
    key = jax.random.PRNGKey(0)
    k_x, k_w = jax.random.split(key)

    N, C_IN, H, W = 2, 3, 16, 16          # Stem hard-codes 3 input channels
    C_OUT = 8

    # Quantize test inputs to bf16-representable values so the kernel's bf16 fast path and the
    # f32 reference see identical operands (bf16 x bf16 products are exact in the f32 accumulator).
    x = jax.random.normal(k_x, (N, C_IN, H, W), dtype=jnp.float32)
    x = x.astype(jnp.bfloat16).astype(jnp.float32)
    fan_in = C_IN * 3 * 3
    conv_weight = jax.random.normal(k_w, (C_OUT, C_IN, 3, 3), dtype=jnp.float32) * (2.0 / fan_in) ** 0.5
    conv_weight = conv_weight.astype(jnp.bfloat16).astype(jnp.float32)
    gamma = 0.5 + 0.125 * jnp.arange(C_OUT, dtype=jnp.float32)   # exactly representable affine
    beta = 0.25 - 0.0625 * jnp.arange(C_OUT, dtype=jnp.float32)

    out = jax.block_until_ready(stem_forward(x, conv_weight, gamma, beta))
    ref = jax.block_until_ready(stem_reference(x, conv_weight, gamma, beta))

    assert out.shape == (N, C_OUT, H // 2, W // 2), out.shape
    max_err = float(jnp.max(jnp.abs(out - ref)))
    assert jnp.allclose(out, ref, atol=2e-3, rtol=2e-3), max_err
    print("KERNEL_OK")
</pallas_src>

<mosaic_0001>
module attributes {stable_mosaic.version = 11 : i64} {
  func.func @stem_stats_kernel(%arg0: i32, %arg1: memref<32x128xbf16, #tpu.memory_space<vmem>>, %arg2: memref<8x32xbf16, #tpu.memory_space<vmem>>, %arg3: memref<8x1xf32, #tpu.memory_space<vmem>>, %arg4: memref<8x1xf32, #tpu.memory_space<vmem>>) attributes {dimension_semantics = [#tpu.dimension_semantics<arbitrary>], iteration_bounds = array<i64: 1>, scalar_prefetch = 0 : i64, scratch_operands = 0 : i64, tpu.core_type = #tpu.core_type<tc>, window_params = [{transform_indices = @transform_0, window_bounds = array<i64: 32, 128>}, {pipeline_mode = #tpu.pipeline_mode<synchronous>, transform_indices = @transform_1, window_bounds = array<i64: 8, 32>}, {pipeline_mode = #tpu.pipeline_mode<synchronous>, transform_indices = @transform_2, window_bounds = array<i64: 8, 1>}, {pipeline_mode = #tpu.pipeline_mode<synchronous>, transform_indices = @transform_3, window_bounds = array<i64: 8, 1>}]} {
    %c0 = arith.constant 0 : index
    %c0_0 = arith.constant 0 : index
    %0 = vector.load %arg2[%c0, %c0_0] : memref<8x32xbf16, #tpu.memory_space<vmem>>, vector<8x32xbf16>
    %c0_1 = arith.constant 0 : index
    %c0_2 = arith.constant 0 : index
    %1 = vector.load %arg1[%c0_1, %c0_2] : memref<32x128xbf16, #tpu.memory_space<vmem>>, vector<32x128xbf16>
    %cst = arith.constant dense<0.000000e+00> : vector<8x128xf32>
    %2 = tpu.matmul %0, %1, %cst {dimension_numbers = #tpu.dot_dimension_numbers<[1], [0], [0], [1], [0, 0, 1, 1], [], []>} : vector<8x32xbf16>, vector<32x128xbf16>, vector<8x128xf32> -> vector<8x128xf32>
    %cst_3 = arith.constant dense<0.000000e+00> : vector<8xf32>
    %3 = vector.multi_reduction <add>, %2, %cst_3 [1] : vector<8x128xf32> to vector<8xf32>
    %4 = vector.shape_cast %3 : vector<8xf32> to vector<8x1xf32>
    %5 = arith.mulf %2, %2 : vector<8x128xf32>
    %cst_4 = arith.constant dense<0.000000e+00> : vector<8xf32>
    %6 = vector.multi_reduction <add>, %5, %cst_4 [1] : vector<8x128xf32> to vector<8xf32>
    %7 = vector.shape_cast %6 : vector<8xf32> to vector<8x1xf32>
    %c0_i32 = arith.constant 0 : i32
    %8 = arith.cmpi eq, %arg0, %c0_i32 : i32
    %9 = arith.extui %8 : i1 to i32
    %c0_i32_5 = arith.constant 0 : i32
    %10 = arith.cmpi ne, %9, %c0_i32_5 : i32
    scf.if %10 {
      %cst_14 = arith.constant 0.000000e+00 : f32
      %17 = vector.broadcast %cst_14 : f32 to vector<8x1xf32>
      %c0_15 = arith.constant 0 : index
      %c0_16 = arith.constant 0 : index
      %18 = vector.load %arg3[%c0_15, %c0_16] : memref<8x1xf32, #tpu.memory_space<vmem>>, vector<8x1xf32>
      tpu.vector_store %arg3[%c0_15, %c0_16], %17 {strides = array<i32>} : memref<8x1xf32, #tpu.memory_space<vmem>>, vector<8x1xf32>,
      %cst_17 = arith.constant 0.000000e+00 : f32
      %19 = vector.broadcast %cst_17 : f32 to vector<8x1xf32>
      %c0_18 = arith.constant 0 : index
      %c0_19 = arith.constant 0 : index
      %20 = vector.load %arg4[%c0_18, %c0_19] : memref<8x1xf32, #tpu.memory_space<vmem>>, vector<8x1xf32>
      tpu.vector_store %arg4[%c0_18, %c0_19], %19 {strides = array<i32>} : memref<8x1xf32, #tpu.memory_space<vmem>>, vector<8x1xf32>,
    } else {
    }
    %c0_6 = arith.constant 0 : index
    %c0_7 = arith.constant 0 : index
    %11 = vector.load %arg3[%c0_6, %c0_7] : memref<8x1xf32, #tpu.memory_space<vmem>>, vector<8x1xf32>
    %12 = arith.addf %11, %4 : vector<8x1xf32>
    %c0_8 = arith.constant 0 : index
    %c0_9 = arith.constant 0 : index
    %13 = vector.load %arg3[%c0_8, %c0_9] : memref<8x1xf32, #tpu.memory_space<vmem>>, vector<8x1xf32>
    tpu.vector_store %arg3[%c0_8, %c0_9], %12 {strides = array<i32>} : memref<8x1xf32, #tpu.memory_space<vmem>>, vector<8x1xf32>,
    %c0_10 = arith.constant 0 : index
    %c0_11 = arith.constant 0 : index
    %14 = vector.load %arg4[%c0_10, %c0_11] : memref<8x1xf32, #tpu.memory_space<vmem>>, vector<8x1xf32>
    %15 = arith.addf %14, %7 : vector<8x1xf32>
    %c0_12 = arith.constant 0 : index
    %c0_13 = arith.constant 0 : index
    %16 = vector.load %arg4[%c0_12, %c0_13] : memref<8x1xf32, #tpu.memory_space<vmem>>, vector<8x1xf32>
    tpu.vector_store %arg4[%c0_12, %c0_13], %15 {strides = array<i32>} : memref<8x1xf32, #tpu.memory_space<vmem>>, vector<8x1xf32>,
    return
  }
  func.func @transform_0(%arg0: i32) -> (i32, i32) {
    %c0_i32 = arith.constant 0 : i32
    %c0_i32_0 = arith.constant 0 : i32
    return %c0_i32, %arg0 : i32, i32
  }
  func.func @transform_1(%arg0: i32) -> (i32, i32) {
    %c0_i32 = arith.constant 0 : i32
    %c0_i32_0 = arith.constant 0 : i32
    %c0_i32_1 = arith.constant 0 : i32
    return %c0_i32, %c0_i32_0 : i32, i32
  }
  func.func @transform_2(%arg0: i32) -> (i32, i32) {
    %c0_i32 = arith.constant 0 : i32
    %c0_i32_0 = arith.constant 0 : i32
    %c0_i32_1 = arith.constant 0 : i32
    return %c0_i32, %c0_i32_0 : i32, i32
  }
  func.func @transform_3(%arg0: i32) -> (i32, i32) {
    %c0_i32 = arith.constant 0 : i32
    %c0_i32_0 = arith.constant 0 : i32
    %c0_i32_1 = arith.constant 0 : i32
    return %c0_i32, %c0_i32_0 : i32, i32
  }
}

</mosaic_0001>

<llo_original>
// kernel: tpu_custom_call.1
$region0: #{tpu_custom_call.1}
  #allocation0 [shape = 'u32[]', space=smem, size = 0x4, offset = 0x4, fixed_abs, tag = 'smem constant byte address 0x4 - core index']
  #allocation1 [shape = 'u32[72,128]{1,0:T(1,128)}', space=vmem, size = 0x9000, scoped, tag = 'internal scratch']
  %s0 = inlined_call_operand.hbm [shape: bf16[32,128], index: 0, kind: input, shape index: {}]
  %s1 = inlined_call_operand.hbm [shape: bf16[8,32], index: 1, kind: input, shape index: {}]
  %s2 = inlined_call_operand.vmem [shape: f32[8,1], index: 2, kind: output, shape index: {0}]
  %s3 = inlined_call_operand.vmem [shape: f32[8,1], index: 3, kind: output, shape index: {1}]
  %4 = xla_tuple %s2, %s3
  %s5 = sld [smem:[#allocation0]]
  $region38: #{tpu_custom_call.1} parent=0
    _
  %s7 = ssub.s32 1, %s5
  %s8 = scalar_select 0, %s7, %s5
  $region1: #{tpu_custom_call.1} parent=0
    #allocation2 [shape = 'u8[8192]{0}', space=vmem, size = 0x2000, scoped, tag = 'input window, operand 0, single buffered']
    #allocation3 [shape = 's32[1]{0}', space=sflag, size = 0x4, scoped, tag = 'scoped memory for tpu_custom_call.1']
    #allocation4 [shape = 'u8[2048]{0}', space=vmem, size = 0x800, scoped, tag = 'input window, operand 1, single buffered']
    #allocation5 [shape = 's32[1]{0}', space=sflag, size = 0x4, scoped, tag = 'scoped memory for tpu_custom_call.1']
    %9 = vsyncpa [#allocation3], 0
    %10 = vsyncpa [#allocation5], 0
    // Predicated region
    $region2: #{tpu_custom_call.1} parent=1 // pred_check
      _
    $region3: #{tpu_custom_call.1} parent=1 // pred_check_branch
      %12 = sbr.rel (0) target = $region5
    $region4: #{tpu_custom_call.1} parent=1 // pred_region
      %14 = vsyncadd [#allocation3], 0
      %s15 = sshll.u32 %s0, 4
      %s16 = int_to_ptr.hbm [resolvable:$true] %s15
      %s17 = sshll.u32 [#allocation2], 4
      %s18 = int_to_ptr.vmem [resolvable:$true] %s17
      %23 = dma.hbm_to_vmem [thread:$0]  %s16, 256, %s18, [#allocation3], 64, 64, 4
    $region5: #{tpu_custom_call.1} parent=1 // pred_fallthru
      _
    // Predicated region
    $region6: #{tpu_custom_call.1} parent=1 // pred_check
      _
    $region7: #{tpu_custom_call.1} parent=1 // pred_check_branch
      %25 = sbr.rel (0) target = $region9
    $region8: #{tpu_custom_call.1} parent=1 // pred_region
      %27 = vsyncadd [#allocation5], 0
      %s29 = sshll.u32 %s1, 4
      %s30 = int_to_ptr.hbm [resolvable:$true] %s29
      %s31 = sshll.u32 [#allocation4], 4
      %s32 = int_to_ptr.vmem [resolvable:$true] %s31
      %34 = dma.hbm_to_vmem [thread:$0]  %s30, 64, %s32, [#allocation5]
    $region9: #{tpu_custom_call.1} parent=1 // pred_fallthru
      _
    // Predicated region
    $region10: #{tpu_custom_call.1} parent=1 // pred_check
      _
    $region11: #{tpu_custom_call.1} parent=1 // pred_check_branch
      %36 = sbr.rel (0) target = $region13
    $region12: #{tpu_custom_call.1} parent=1 // pred_region
      %38 = dma.done [#allocation3], 256
    $region13: #{tpu_custom_call.1} parent=1 // pred_fallthru
      _
    // Predicated region
    $region14: #{tpu_custom_call.1} parent=1 // pred_check
      _
    $region15: #{tpu_custom_call.1} parent=1 // pred_check_branch
      %40 = sbr.rel (0) target = $region17
    $region16: #{tpu_custom_call.1} parent=1 // pred_region
      %42 = dma.done [#allocation5], 64
    $region17: #{tpu_custom_call.1} parent=1 // pred_fallthru
      _
    %v44 = vld [vmem:[#allocation4] sm:$0xf]
    %v45 = vld [vmem:[#allocation2] sm:$0xf]
    %v46 = vld [vmem:[#allocation2 + $0x4] sm:$0xf]
    %v47 = vld [vmem:[#allocation2 + $0x8] sm:$0xf]
    %v48 = vld [vmem:[#allocation2 + $0xc] sm:$0xf]
    %v53 = vunpack.c.l.b16 %v45
    %v54 = vunpack.c.l.b16 %v46
    %v55 = vunpack.c.l.b16 %v47
    %v56 = vunpack.c.l.b16 %v48
    %v57 = vpack.c.b16 %v54, %v53
    %v58 = vpack.c.b16 %v56, %v55
    %vm61 = vcmask 261120
    %v63 = vsel %vm61, %v44, 0
    %65 = vmatpush.bf16.msra.mxu0 0
    %66 = vmatpush.bf16.msra.mxu0 0
    %67 = vmatpush.bf16.msra.mxu0 0
    %68 = vmatpush.bf16.msra.mxu0 0
    %69 = vmatpush.bf16.msra.mxu0 0
    %70 = vmatpush.bf16.msra.mxu0 0
    %71 = vmatpush.bf16.msra.mxu0 %v58
    %72 = vmatpush.bf16.msra.mxu0 %v57
    %73 = vmatmul.bf16.gmra.mxu0 %v63
    %v74 = vpop.f32.mrf.mxu0
    %v75 = vadd.f32 0.0, %v74
    %v76 = vpop.f32.mrf.mxu0
    %77 = vdwg.mxu0
    %78 = vadd.xlane.f32.xlu0 %v75
    %v79 = vpop.xlane.xlu0 %78
    %v80 = vmul.f32 %v75, %v75
    %81 = vadd.xlane.f32.xlu0 %v80
    %v82 = vpop.xlane.xlu0 %81
    %p83 = scmp.eq.s32.totalorder 0, 0
    // Predicated region
    $region18: #{tpu_custom_call.1} parent=1 // pred_check
      %p84 = pneg %p83
    $region19: #{tpu_custom_call.1} parent=1 // pred_check_branch
      %86 = sbr.rel (%p84) target = $region21
    $region20: #{tpu_custom_call.1} parent=1 // pred_region
      %vm87 = vcmask 7168
      %88 = vst.msk [vmem:[%s2] sm:$0xff] %vm87, 0.0
      %89 = vst.msk [vmem:[%s3] sm:$0xff] %vm87, 0.0
    $region21: #{tpu_custom_call.1} parent=1 // pred_fallthru
      _
    %v90 = vld [vmem:[%s2] sm:$0xff]
    %v91 = vadd.f32 %v90, %v79
    %vm92 = vcmask 7168
    %93 = vst.msk [vmem:[%s2] sm:$0xff] %vm92, %v91
    %v94 = vld [vmem:[%s3] sm:$0xff]
    %v95 = vadd.f32 %v94, %v82
    %96 = vst.msk [vmem:[%s3] sm:$0xff] %vm92, %v95
    // Predicated region
    $region22: #{tpu_custom_call.1} parent=1 // pred_check
      _
    $region23: #{tpu_custom_call.1} parent=1 // pred_check_branch
      %98 = sbr.rel (0) target = $region25
    $region24: #{tpu_custom_call.1} parent=1 // pred_region
      _
    $region25: #{tpu_custom_call.1} parent=1 // pred_fallthru
      _
    // Predicated region
    $region26: #{tpu_custom_call.1} parent=1 // pred_check
      _
    $region27: #{tpu_custom_call.1} parent=1 // pred_check_branch
      %100 = sbr.rel (0) target = $region29
    $region28: #{tpu_custom_call.1} parent=1 // pred_region
      _
    $region29: #{tpu_custom_call.1} parent=1 // pred_fallthru
      _
    // Predicated region
    $region30: #{tpu_custom_call.1} parent=1 // pred_check
      _
    $region31: #{tpu_custom_call.1} parent=1 // pred_check_branch
      %102 = sbr.rel (0) target = $region33
    $region32: #{tpu_custom_call.1} parent=1 // pred_region
      _
    $region33: #{tpu_custom_call.1} parent=1 // pred_fallthru
      _
    // Predicated region
    $region34: #{tpu_custom_call.1} parent=1 // pred_check
      _
    $region35: #{tpu_custom_call.1} parent=1 // pred_check_branch
      %104 = sbr.rel (0) target = $region37
    $region36: #{tpu_custom_call.1} parent=1 // pred_region
      _
    $region37: #{tpu_custom_call.1} parent=1 // pred_fallthru
      _
    %105 = vsyncpa [#allocation3], 1
    %106 = vsyncpa [#allocation5], 1

</llo_original>
